<compile_context>
chip_gen: v7x
topology: tpu7x:2x2x1
jax: 0.10.0
libtpu: 0.0.40
codegen_flags: <defaults>
</compile_context>

<pallas_src>
import math
import functools

import jax
import jax.numpy as jnp
import numpy as np
from jax.experimental import pallas as pl
from jax.experimental.pallas import tpu as pltpu


def _gt_attn_kernel(*refs, num_heads, head_dim, has_mask, mask_heads,
                    write_probs):
    # Ref order: x, wqkv, bqkv, [mask], ctx, [probs]
    x_ref, wqkv_ref, bqkv_ref = refs[0], refs[1], refs[2]
    i = 3
    mask_ref = None
    if has_mask:
        mask_ref = refs[i]
        i += 1
    ctx_ref = refs[i]
    i += 1
    probs_ref = refs[i] if write_probs else None

    hidden = num_heads * head_dim
    x = x_ref[0]                       # [S, H]
    w = wqkv_ref[...]                  # [H, 3H]
    b = bqkv_ref[...]                  # [1, 3H] (f32)

    # Fused Q/K/V projection: single lane-dense MXU matmul, f32 accumulation.
    qkv = jnp.dot(x, w, preferred_element_type=jnp.float32) + b   # [S, 3H]

    scale = 1.0 / math.sqrt(head_dim)

    for h in range(num_heads):
        lo = h * head_dim
        qh = qkv[:, lo:lo + head_dim]                              # [S, D]
        kh = qkv[:, hidden + lo:hidden + lo + head_dim]            # [S, D]
        vh = qkv[:, 2 * hidden + lo:2 * hidden + lo + head_dim]    # [S, D]

        # Scaled dot-product attention scores for this head.
        s = jnp.dot(qh, kh.T, preferred_element_type=jnp.float32) * scale
        if has_mask:
            # Compact mask [mq, S] (mq in {1, S}) broadcasts over queries.
            mh = mask_ref[0, h if mask_heads > 1 else 0]
            s = s + mh.astype(jnp.float32)

        # Numerically stable softmax (f32).
        m = jnp.max(s, axis=-1, keepdims=True)
        e = jnp.exp(s - m)
        denom = jnp.sum(e, axis=-1, keepdims=True)
        p = e * pl.reciprocal(denom, approx=False)

        if write_probs:
            probs_ref[0, h] = p.astype(probs_ref.dtype)

        ctx_h = jnp.dot(p.astype(vh.dtype), vh,
                        preferred_element_type=jnp.float32)        # [S, D]
        # Static lane-slice store into the lane-dense [S, H] output block.
        ctx_ref[0, :, lo:lo + head_dim] = ctx_h.astype(ctx_ref.dtype)


def gt_self_attention(hidden_states, params, num_heads, attention_mask=None,
                      output_attentions=False):
    """hidden_states: [B, S, H].  params: nn.Linear-style weights/biases
    ('wq','wk','wv' [H,H] = [out,in]; 'bq','bk','bv' [H]).

    Returns (context [B, S, H],) or (context, attention_probs [B, nh, S, S]).
    """
    B, S, H = hidden_states.shape
    assert H % num_heads == 0
    D = H // num_heads
    dtype = hidden_states.dtype

    # Fuse Q/K/V projections: x @ wqkv == [query(x) | key(x) | value(x)].
    wqkv = jnp.concatenate(
        [params["wq"].T, params["wk"].T, params["wv"].T], axis=1).astype(dtype)
    bqkv = jnp.concatenate(
        [params["bq"], params["bk"], params["bv"]]).reshape(1, 3 * H)
    bqkv = bqkv.astype(jnp.float32)

    has_mask = attention_mask is not None
    mask_heads, mask_rows = 1, 1

    inputs = [hidden_states, wqkv, bqkv]
    in_specs = [
        pl.BlockSpec((1, S, H), lambda b: (b, 0, 0)),
        pl.BlockSpec((H, 3 * H), lambda b: (0, 0)),      # resident across grid
        pl.BlockSpec((1, 3 * H), lambda b: (0, 0)),
    ]
    if has_mask:
        m = jnp.asarray(attention_mask, jnp.float32)
        while m.ndim < 4:
            m = m[None]
        _, mh, mq, _ = m.shape
        mask_heads = num_heads if mh != 1 else 1
        mask_rows = S if mq != 1 else 1
        # Keep compact where broadcastable (head/query dims stay 1).
        m = jnp.broadcast_to(m, (B, mask_heads, mask_rows, S))
        inputs.append(m)
        in_specs.append(
            pl.BlockSpec((1, mask_heads, mask_rows, S),
                         lambda b: (b, 0, 0, 0)))

    ctx_spec = pl.BlockSpec((1, S, H), lambda b: (b, 0, 0))
    ctx_shape = jax.ShapeDtypeStruct((B, S, H), dtype)
    if output_attentions:
        out_shape = (ctx_shape,
                     jax.ShapeDtypeStruct((B, num_heads, S, S), jnp.float32))
        out_specs = [ctx_spec,
                     pl.BlockSpec((1, num_heads, S, S),
                                  lambda b: (b, 0, 0, 0))]
    else:
        out_shape = ctx_shape
        out_specs = ctx_spec

    kernel = functools.partial(
        _gt_attn_kernel, num_heads=num_heads, head_dim=D, has_mask=has_mask,
        mask_heads=mask_heads, write_probs=output_attentions)

    # Raise the scoped-VMEM limit only when the working set clearly exceeds the
    # smallest default (16 MiB on v5e); cap at v7x physical VMEM (64 MiB).
    est_bytes = 4 * (2 * S * H * 2                       # x in + ctx out (x2 buf)
                     + 2 * H * 3 * H                     # fused weights
                     + S * 3 * H + 4 * S * S             # qkv + score temporaries
                     + (2 * num_heads * S * S if output_attentions else 0)
                     + (2 * mask_heads * mask_rows * S if has_mask else 0))
    vmem_limit = None
    if est_bytes > 16 * 1024 * 1024:
        vmem_limit = min(64 * 1024 * 1024, int(est_bytes * 1.5))

    result = pl.pallas_call(
        kernel,
        out_shape=out_shape,
        grid_spec=pltpu.PrefetchScalarGridSpec(
            num_scalar_prefetch=0,
            grid=(B,),
            in_specs=in_specs,
            out_specs=out_specs,
        ),
        compiler_params=pltpu.CompilerParams(
            dimension_semantics=("parallel",),
            vmem_limit_bytes=vmem_limit),
    )(*inputs)

    if output_attentions:
        context, probs = result
        return (context, probs)
    return (result,)


def _reference(hidden_states, params, num_heads, attention_mask=None):
    B, S, H = hidden_states.shape
    D = H // num_heads
    q = hidden_states @ params["wq"].T + params["bq"]
    k = hidden_states @ params["wk"].T + params["bk"]
    v = hidden_states @ params["wv"].T + params["bv"]

    def heads(t):
        return jnp.transpose(t.reshape(B, S, num_heads, D), (0, 2, 1, 3))

    q, k, v = heads(q), heads(k), heads(v)
    scores = jnp.einsum("bhqd,bhkd->bhqk", q, k) / math.sqrt(D)
    if attention_mask is not None:
        scores = scores + attention_mask
    probs = jax.nn.softmax(scores, axis=-1)
    ctx = jnp.einsum("bhqk,bhkd->bhqd", probs, v)
    ctx = jnp.transpose(ctx, (0, 2, 1, 3)).reshape(B, S, H)
    return ctx, probs


if __name__ == "__main__":
    # Config: hidden_size=32, num_attention_heads=4 (head_size=8), seq=8, batch=2.
    B, S, H, NH = 2, 8, 32, 4

    key = jax.random.PRNGKey(0)
    k_x, k_wq, k_wk, k_wv, k_bq, k_bk, k_bv, k_m = jax.random.split(key, 8)

    hidden_states = jax.random.normal(k_x, (B, S, H), dtype=jnp.float32)

    bound = 1.0 / math.sqrt(H)
    params = {
        "wq": jax.random.uniform(k_wq, (H, H), jnp.float32, -bound, bound),
        "wk": jax.random.uniform(k_wk, (H, H), jnp.float32, -bound, bound),
        "wv": jax.random.uniform(k_wv, (H, H), jnp.float32, -bound, bound),
        "bq": jax.random.uniform(k_bq, (H,), jnp.float32, -bound, bound),
        "bk": jax.random.uniform(k_bk, (H,), jnp.float32, -bound, bound),
        "bv": jax.random.uniform(k_bv, (H,), jnp.float32, -bound, bound),
    }

    # --- no mask, with attention_probs output -------------------------------
    context, probs = gt_self_attention(hidden_states, params, NH,
                                       attention_mask=None,
                                       output_attentions=True)
    jax.block_until_ready(context)
    jax.block_until_ready(probs)
    ref_ctx, ref_probs = _reference(hidden_states, params, NH)
    np.testing.assert_allclose(np.asarray(context), np.asarray(ref_ctx),
                               rtol=1e-5, atol=1e-5)
    np.testing.assert_allclose(np.asarray(probs), np.asarray(ref_probs),
                               rtol=1e-5, atol=1e-5)

    # --- compact BERT-style additive mask [B, 1, 1, S], context-only path ---
    keep = (jax.random.uniform(k_m, (B, 1, 1, S)) > 0.25).astype(jnp.float32)
    attn_mask = (1.0 - keep) * -10000.0
    (context_m,) = gt_self_attention(hidden_states, params, NH,
                                     attention_mask=attn_mask,
                                     output_attentions=False)
    jax.block_until_ready(context_m)
    ref_ctx_m, _ = _reference(hidden_states, params, NH,
                              attention_mask=attn_mask)
    np.testing.assert_allclose(np.asarray(context_m), np.asarray(ref_ctx_m),
                               rtol=1e-5, atol=1e-5)

    print("KERNEL_OK")
</pallas_src>

<mosaic_0001>
module attributes {stable_mosaic.version = 11 : i64} {
  func.func @_gt_attn_kernel(%arg0: i32, %arg1: memref<1x8x32xf32, #tpu.memory_space<vmem>>, %arg2: memref<32x96xf32, #tpu.memory_space<vmem>>, %arg3: memref<1x96xf32, #tpu.memory_space<vmem>>, %arg4: memref<1x8x32xf32, #tpu.memory_space<vmem>>, %arg5: memref<1x4x8x8xf32, #tpu.memory_space<vmem>>) attributes {dimension_semantics = [#tpu.dimension_semantics<parallel>], iteration_bounds = array<i64: 2>, scalar_prefetch = 0 : i64, scratch_operands = 0 : i64, tpu.core_type = #tpu.core_type<tc>, window_params = [{transform_indices = @transform_0, window_bounds = array<i64: 1, 8, 32>}, {pipeline_mode = #tpu.pipeline_mode<synchronous>, transform_indices = @transform_1, window_bounds = array<i64: 32, 96>}, {pipeline_mode = #tpu.pipeline_mode<synchronous>, transform_indices = @transform_2, window_bounds = array<i64: 1, 96>}, {transform_indices = @transform_3, window_bounds = array<i64: 1, 8, 32>}, {transform_indices = @transform_4, window_bounds = array<i64: 1, 4, 8, 8>}]} {
    %c0 = arith.constant 0 : index
    %c0_0 = arith.constant 0 : index
    %c0_1 = arith.constant 0 : index
    %0 = vector.load %arg1[%c0, %c0_0, %c0_1] : memref<1x8x32xf32, #tpu.memory_space<vmem>>, vector<1x8x32xf32>
    %1 = vector.shape_cast %0 : vector<1x8x32xf32> to vector<8x32xf32>
    %c0_2 = arith.constant 0 : index
    %c0_3 = arith.constant 0 : index
    %2 = vector.load %arg2[%c0_2, %c0_3] : memref<32x96xf32, #tpu.memory_space<vmem>>, vector<32x96xf32>
    %c0_4 = arith.constant 0 : index
    %c0_5 = arith.constant 0 : index
    %3 = vector.load %arg3[%c0_4, %c0_5] : memref<1x96xf32, #tpu.memory_space<vmem>>, vector<1x96xf32>
    %cst = arith.constant dense<0.000000e+00> : vector<8x96xf32>
    %4 = tpu.matmul %1, %2, %cst {dimension_numbers = #tpu.dot_dimension_numbers<[1], [0], [0], [1], [0, 0, 1, 1], [], []>} : vector<8x32xf32>, vector<32x96xf32>, vector<8x96xf32> -> vector<8x96xf32>
    %5 = vector.broadcast %3 : vector<1x96xf32> to vector<8x96xf32>
    %6 = arith.addf %4, %5 : vector<8x96xf32>
    %7 = vector.extract_strided_slice %6 {offsets = [0, 0], sizes = [8, 8], strides = [1, 1]} : vector<8x96xf32> to vector<8x8xf32>
    %8 = vector.extract_strided_slice %6 {offsets = [0, 32], sizes = [8, 8], strides = [1, 1]} : vector<8x96xf32> to vector<8x8xf32>
    %9 = vector.extract_strided_slice %6 {offsets = [0, 64], sizes = [8, 8], strides = [1, 1]} : vector<8x96xf32> to vector<8x8xf32>
    %10 = tpu.transpose %8, [1, 0] : vector<8x8xf32> -> vector<8x8xf32>
    %cst_6 = arith.constant dense<0.000000e+00> : vector<8x8xf32>
    %11 = tpu.matmul %7, %10, %cst_6 {dimension_numbers = #tpu.dot_dimension_numbers<[1], [0], [0], [1], [0, 0, 1, 1], [], []>} : vector<8x8xf32>, vector<8x8xf32>, vector<8x8xf32> -> vector<8x8xf32>
    %cst_7 = arith.constant 0.353553385 : f32
    %12 = vector.broadcast %cst_7 : f32 to vector<8x8xf32>
    %13 = arith.mulf %11, %12 : vector<8x8xf32>
    %cst_8 = arith.constant dense<0xFF800000> : vector<8xf32>
    %14 = vector.multi_reduction <maximumf>, %13, %cst_8 [1] : vector<8x8xf32> to vector<8xf32>
    %15 = vector.shape_cast %14 : vector<8xf32> to vector<8x1xf32>
    %16 = vector.broadcast %15 : vector<8x1xf32> to vector<8x8xf32>
    %17 = arith.subf %13, %16 : vector<8x8xf32>
    %18 = math.exp %17 : vector<8x8xf32>
    %cst_9 = arith.constant dense<0.000000e+00> : vector<8xf32>
    %19 = vector.multi_reduction <add>, %18, %cst_9 [1] : vector<8x8xf32> to vector<8xf32>
    %20 = vector.shape_cast %19 : vector<8xf32> to vector<8x1xf32>
    %21 = tpu.reciprocal %20 : vector<8x1xf32> -> vector<8x1xf32>
    %22 = vector.broadcast %21 : vector<8x1xf32> to vector<8x8xf32>
    %23 = arith.mulf %18, %22 : vector<8x8xf32>
    %c0_10 = arith.constant 0 : index
    %c0_11 = arith.constant 0 : index
    %c0_12 = arith.constant 0 : index
    %c0_13 = arith.constant 0 : index
    %24 = vector.load %arg5[%c0_10, %c0_11, %c0_12, %c0_13] : memref<1x4x8x8xf32, #tpu.memory_space<vmem>>, vector<1x1x8x8xf32>
    %25 = vector.shape_cast %24 : vector<1x1x8x8xf32> to vector<8x8xf32>
    %26 = vector.shape_cast %23 : vector<8x8xf32> to vector<1x1x8x8xf32>
    tpu.vector_store %arg5[%c0_10, %c0_11, %c0_12, %c0_13], %26 {strides = array<i32>} : memref<1x4x8x8xf32, #tpu.memory_space<vmem>>, vector<1x1x8x8xf32>,
    %cst_14 = arith.constant dense<0.000000e+00> : vector<8x8xf32>
    %27 = tpu.matmul %23, %9, %cst_14 {dimension_numbers = #tpu.dot_dimension_numbers<[1], [0], [0], [1], [0, 0, 1, 1], [], []>} : vector<8x8xf32>, vector<8x8xf32>, vector<8x8xf32> -> vector<8x8xf32>
    %c0_15 = arith.constant 0 : index
    %c0_16 = arith.constant 0 : index
    %c0_17 = arith.constant 0 : index
    %28 = vector.load %arg4[%c0_15, %c0_16, %c0_17] : memref<1x8x32xf32, #tpu.memory_space<vmem>>, vector<1x8x8xf32>
    %29 = vector.shape_cast %28 : vector<1x8x8xf32> to vector<8x8xf32>
    %30 = vector.shape_cast %27 : vector<8x8xf32> to vector<1x8x8xf32>
    tpu.vector_store %arg4[%c0_15, %c0_16, %c0_17], %30 {strides = array<i32>} : memref<1x8x32xf32, #tpu.memory_space<vmem>>, vector<1x8x8xf32>,
    %31 = vector.extract_strided_slice %6 {offsets = [0, 8], sizes = [8, 8], strides = [1, 1]} : vector<8x96xf32> to vector<8x8xf32>
    %32 = vector.extract_strided_slice %6 {offsets = [0, 40], sizes = [8, 8], strides = [1, 1]} : vector<8x96xf32> to vector<8x8xf32>
    %33 = vector.extract_strided_slice %6 {offsets = [0, 72], sizes = [8, 8], strides = [1, 1]} : vector<8x96xf32> to vector<8x8xf32>
    %34 = tpu.transpose %32, [1, 0] : vector<8x8xf32> -> vector<8x8xf32>
    %cst_18 = arith.constant dense<0.000000e+00> : vector<8x8xf32>
    %35 = tpu.matmul %31, %34, %cst_18 {dimension_numbers = #tpu.dot_dimension_numbers<[1], [0], [0], [1], [0, 0, 1, 1], [], []>} : vector<8x8xf32>, vector<8x8xf32>, vector<8x8xf32> -> vector<8x8xf32>
    %cst_19 = arith.constant 0.353553385 : f32
    %36 = vector.broadcast %cst_19 : f32 to vector<8x8xf32>
    %37 = arith.mulf %35, %36 : vector<8x8xf32>
    %cst_20 = arith.constant dense<0xFF800000> : vector<8xf32>
    %38 = vector.multi_reduction <maximumf>, %37, %cst_20 [1] : vector<8x8xf32> to vector<8xf32>
    %39 = vector.shape_cast %38 : vector<8xf32> to vector<8x1xf32>
    %40 = vector.broadcast %39 : vector<8x1xf32> to vector<8x8xf32>
    %41 = arith.subf %37, %40 : vector<8x8xf32>
    %42 = math.exp %41 : vector<8x8xf32>
    %cst_21 = arith.constant dense<0.000000e+00> : vector<8xf32>
    %43 = vector.multi_reduction <add>, %42, %cst_21 [1] : vector<8x8xf32> to vector<8xf32>
    %44 = vector.shape_cast %43 : vector<8xf32> to vector<8x1xf32>
    %45 = tpu.reciprocal %44 : vector<8x1xf32> -> vector<8x1xf32>
    %46 = vector.broadcast %45 : vector<8x1xf32> to vector<8x8xf32>
    %47 = arith.mulf %42, %46 : vector<8x8xf32>
    %c0_22 = arith.constant 0 : index
    %c1 = arith.constant 1 : index
    %c0_23 = arith.constant 0 : index
    %c0_24 = arith.constant 0 : index
    %48 = vector.load %arg5[%c0_22, %c1, %c0_23, %c0_24] : memref<1x4x8x8xf32, #tpu.memory_space<vmem>>, vector<1x1x8x8xf32>
    %49 = vector.shape_cast %48 : vector<1x1x8x8xf32> to vector<8x8xf32>
    %50 = vector.shape_cast %47 : vector<8x8xf32> to vector<1x1x8x8xf32>
    tpu.vector_store %arg5[%c0_22, %c1, %c0_23, %c0_24], %50 {strides = array<i32>} : memref<1x4x8x8xf32, #tpu.memory_space<vmem>>, vector<1x1x8x8xf32>,
    %cst_25 = arith.constant dense<0.000000e+00> : vector<8x8xf32>
    %51 = tpu.matmul %47, %33, %cst_25 {dimension_numbers = #tpu.dot_dimension_numbers<[1], [0], [0], [1], [0, 0, 1, 1], [], []>} : vector<8x8xf32>, vector<8x8xf32>, vector<8x8xf32> -> vector<8x8xf32>
    %c0_26 = arith.constant 0 : index
    %c0_27 = arith.constant 0 : index
    %c8 = arith.constant 8 : index
    %52 = vector.load %arg4[%c0_26, %c0_27, %c8] : memref<1x8x32xf32, #tpu.memory_space<vmem>>, vector<1x8x8xf32>
    %53 = vector.shape_cast %52 : vector<1x8x8xf32> to vector<8x8xf32>
    %54 = vector.shape_cast %51 : vector<8x8xf32> to vector<1x8x8xf32>
    tpu.vector_store %arg4[%c0_26, %c0_27, %c8], %54 {strides = array<i32>} : memref<1x8x32xf32, #tpu.memory_space<vmem>>, vector<1x8x8xf32>,
    %55 = vector.extract_strided_slice %6 {offsets = [0, 16], sizes = [8, 8], strides = [1, 1]} : vector<8x96xf32> to vector<8x8xf32>
    %56 = vector.extract_strided_slice %6 {offsets = [0, 48], sizes = [8, 8], strides = [1, 1]} : vector<8x96xf32> to vector<8x8xf32>
    %57 = vector.extract_strided_slice %6 {offsets = [0, 80], sizes = [8, 8], strides = [1, 1]} : vector<8x96xf32> to vector<8x8xf32>
    %58 = tpu.transpose %56, [1, 0] : vector<8x8xf32> -> vector<8x8xf32>
    %cst_28 = arith.constant dense<0.000000e+00> : vector<8x8xf32>
    %59 = tpu.matmul %55, %58, %cst_28 {dimension_numbers = #tpu.dot_dimension_numbers<[1], [0], [0], [1], [0, 0, 1, 1], [], []>} : vector<8x8xf32>, vector<8x8xf32>, vector<8x8xf32> -> vector<8x8xf32>
    %cst_29 = arith.constant 0.353553385 : f32
    %60 = vector.broadcast %cst_29 : f32 to vector<8x8xf32>
    %61 = arith.mulf %59, %60 : vector<8x8xf32>
    %cst_30 = arith.constant dense<0xFF800000> : vector<8xf32>
    %62 = vector.multi_reduction <maximumf>, %61, %cst_30 [1] : vector<8x8xf32> to vector<8xf32>
    %63 = vector.shape_cast %62 : vector<8xf32> to vector<8x1xf32>
    %64 = vector.broadcast %63 : vector<8x1xf32> to vector<8x8xf32>
    %65 = arith.subf %61, %64 : vector<8x8xf32>
    %66 = math.exp %65 : vector<8x8xf32>
    %cst_31 = arith.constant dense<0.000000e+00> : vector<8xf32>
    %67 = vector.multi_reduction <add>, %66, %cst_31 [1] : vector<8x8xf32> to vector<8xf32>
    %68 = vector.shape_cast %67 : vector<8xf32> to vector<8x1xf32>
    %69 = tpu.reciprocal %68 : vector<8x1xf32> -> vector<8x1xf32>
    %70 = vector.broadcast %69 : vector<8x1xf32> to vector<8x8xf32>
    %71 = arith.mulf %66, %70 : vector<8x8xf32>
    %c0_32 = arith.constant 0 : index
    %c2 = arith.constant 2 : index
    %c0_33 = arith.constant 0 : index
    %c0_34 = arith.constant 0 : index
    %72 = vector.load %arg5[%c0_32, %c2, %c0_33, %c0_34] : memref<1x4x8x8xf32, #tpu.memory_space<vmem>>, vector<1x1x8x8xf32>
    %73 = vector.shape_cast %72 : vector<1x1x8x8xf32> to vector<8x8xf32>
    %74 = vector.shape_cast %71 : vector<8x8xf32> to vector<1x1x8x8xf32>
    tpu.vector_store %arg5[%c0_32, %c2, %c0_33, %c0_34], %74 {strides = array<i32>} : memref<1x4x8x8xf32, #tpu.memory_space<vmem>>, vector<1x1x8x8xf32>,
    %cst_35 = arith.constant dense<0.000000e+00> : vector<8x8xf32>
    %75 = tpu.matmul %71, %57, %cst_35 {dimension_numbers = #tpu.dot_dimension_numbers<[1], [0], [0], [1], [0, 0, 1, 1], [], []>} : vector<8x8xf32>, vector<8x8xf32>, vector<8x8xf32> -> vector<8x8xf32>
    %c0_36 = arith.constant 0 : index
    %c0_37 = arith.constant 0 : index
    %c16 = arith.constant 16 : index
    %76 = vector.load %arg4[%c0_36, %c0_37, %c16] : memref<1x8x32xf32, #tpu.memory_space<vmem>>, vector<1x8x8xf32>
    %77 = vector.shape_cast %76 : vector<1x8x8xf32> to vector<8x8xf32>
    %78 = vector.shape_cast %75 : vector<8x8xf32> to vector<1x8x8xf32>
    tpu.vector_store %arg4[%c0_36, %c0_37, %c16], %78 {strides = array<i32>} : memref<1x8x32xf32, #tpu.memory_space<vmem>>, vector<1x8x8xf32>,
    %79 = vector.extract_strided_slice %6 {offsets = [0, 24], sizes = [8, 8], strides = [1, 1]} : vector<8x96xf32> to vector<8x8xf32>
    %80 = vector.extract_strided_slice %6 {offsets = [0, 56], sizes = [8, 8], strides = [1, 1]} : vector<8x96xf32> to vector<8x8xf32>
    %81 = vector.extract_strided_slice %6 {offsets = [0, 88], sizes = [8, 8], strides = [1, 1]} : vector<8x96xf32> to vector<8x8xf32>
    %82 = tpu.transpose %80, [1, 0] : vector<8x8xf32> -> vector<8x8xf32>
    %cst_38 = arith.constant dense<0.000000e+00> : vector<8x8xf32>
    %83 = tpu.matmul %79, %82, %cst_38 {dimension_numbers = #tpu.dot_dimension_numbers<[1], [0], [0], [1], [0, 0, 1, 1], [], []>} : vector<8x8xf32>, vector<8x8xf32>, vector<8x8xf32> -> vector<8x8xf32>
    %cst_39 = arith.constant 0.353553385 : f32
    %84 = vector.broadcast %cst_39 : f32 to vector<8x8xf32>
    %85 = arith.mulf %83, %84 : vector<8x8xf32>
    %cst_40 = arith.constant dense<0xFF800000> : vector<8xf32>
    %86 = vector.multi_reduction <maximumf>, %85, %cst_40 [1] : vector<8x8xf32> to vector<8xf32>
    %87 = vector.shape_cast %86 : vector<8xf32> to vector<8x1xf32>
    %88 = vector.broadcast %87 : vector<8x1xf32> to vector<8x8xf32>
    %89 = arith.subf %85, %88 : vector<8x8xf32>
    %90 = math.exp %89 : vector<8x8xf32>
    %cst_41 = arith.constant dense<0.000000e+00> : vector<8xf32>
    %91 = vector.multi_reduction <add>, %90, %cst_41 [1] : vector<8x8xf32> to vector<8xf32>
    %92 = vector.shape_cast %91 : vector<8xf32> to vector<8x1xf32>
    %93 = tpu.reciprocal %92 : vector<8x1xf32> -> vector<8x1xf32>
    %94 = vector.broadcast %93 : vector<8x1xf32> to vector<8x8xf32>
    %95 = arith.mulf %90, %94 : vector<8x8xf32>
    %c0_42 = arith.constant 0 : index
    %c3 = arith.constant 3 : index
    %c0_43 = arith.constant 0 : index
    %c0_44 = arith.constant 0 : index
    %96 = vector.load %arg5[%c0_42, %c3, %c0_43, %c0_44] : memref<1x4x8x8xf32, #tpu.memory_space<vmem>>, vector<1x1x8x8xf32>
    %97 = vector.shape_cast %96 : vector<1x1x8x8xf32> to vector<8x8xf32>
    %98 = vector.shape_cast %95 : vector<8x8xf32> to vector<1x1x8x8xf32>
    tpu.vector_store %arg5[%c0_42, %c3, %c0_43, %c0_44], %98 {strides = array<i32>} : memref<1x4x8x8xf32, #tpu.memory_space<vmem>>, vector<1x1x8x8xf32>,
    %cst_45 = arith.constant dense<0.000000e+00> : vector<8x8xf32>
    %99 = tpu.matmul %95, %81, %cst_45 {dimension_numbers = #tpu.dot_dimension_numbers<[1], [0], [0], [1], [0, 0, 1, 1], [], []>} : vector<8x8xf32>, vector<8x8xf32>, vector<8x8xf32> -> vector<8x8xf32>
    %c0_46 = arith.constant 0 : index
    %c0_47 = arith.constant 0 : index
    %c24 = arith.constant 24 : index
    %100 = vector.load %arg4[%c0_46, %c0_47, %c24] : memref<1x8x32xf32, #tpu.memory_space<vmem>>, vector<1x8x8xf32>
    %101 = vector.shape_cast %100 : vector<1x8x8xf32> to vector<8x8xf32>
    %102 = vector.shape_cast %99 : vector<8x8xf32> to vector<1x8x8xf32>
    tpu.vector_store %arg4[%c0_46, %c0_47, %c24], %102 {strides = array<i32>} : memref<1x8x32xf32, #tpu.memory_space<vmem>>, vector<1x8x8xf32>,
    return
  }
  func.func @transform_0(%arg0: i32) -> (i32, i32, i32) {
    %c0_i32 = arith.constant 0 : i32
    %c0_i32_0 = arith.constant 0 : i32
    %c0_i32_1 = arith.constant 0 : i32
    return %arg0, %c0_i32, %c0_i32_0 : i32, i32, i32
  }
  func.func @transform_1(%arg0: i32) -> (i32, i32) {
    %c0_i32 = arith.constant 0 : i32
    %c0_i32_0 = arith.constant 0 : i32
    %c0_i32_1 = arith.constant 0 : i32
    return %c0_i32, %c0_i32_0 : i32, i32
  }
  func.func @transform_2(%arg0: i32) -> (i32, i32) {
    %c0_i32 = arith.constant 0 : i32
    %c0_i32_0 = arith.constant 0 : i32
    %c0_i32_1 = arith.constant 0 : i32
    return %c0_i32, %c0_i32_0 : i32, i32
  }
  func.func @transform_3(%arg0: i32) -> (i32, i32, i32) {
    %c0_i32 = arith.constant 0 : i32
    %c0_i32_0 = arith.constant 0 : i32
    %c0_i32_1 = arith.constant 0 : i32
    return %arg0, %c0_i32, %c0_i32_0 : i32, i32, i32
  }
  func.func @transform_4(%arg0: i32) -> (i32, i32, i32, i32) {
    %c0_i32 = arith.constant 0 : i32
    %c0_i32_0 = arith.constant 0 : i32
    %c0_i32_1 = arith.constant 0 : i32
    %c0_i32_2 = arith.constant 0 : i32
    return %arg0, %c0_i32, %c0_i32_0, %c0_i32_1 : i32, i32, i32, i32
  }
}

</mosaic_0001>

<llo_original>
// kernel: tpu_custom_call.1
$region0: #{tpu_custom_call.1}
  #allocation0 [shape = 'u32[]', space=smem, size = 0x4, offset = 0x4, fixed_abs, tag = 'smem constant byte address 0x4 - core index']
  #allocation1 [shape = 'u32[144,128]{1,0:T(1,128)}', space=vmem, size = 0x12000, scoped, tag = 'internal scratch']
  %s0 = inlined_call_operand.hbm [shape: f32[2,8,32], index: 0, kind: input, shape index: {}]
  %s1 = inlined_call_operand.hbm [shape: f32[32,96], index: 1, kind: input, shape index: {}]
  %s2 = inlined_call_operand.vmem [shape: f32[1,96], index: 2, kind: input, shape index: {}]
  %s3 = inlined_call_operand.hbm [shape: f32[2,8,32], index: 3, kind: output, shape index: {0}]
  %s4 = inlined_call_operand.hbm [shape: f32[2,4,8,8], index: 4, kind: output, shape index: {1}]
  %5 = xla_tuple %s3, %s4
  %s6 = sld [smem:[#allocation0]]
  $region61: #{tpu_custom_call.1} parent=0
    _
  %s8 = ssub.s32 1, %s6
  %s9 = scalar_select 0, %s8, %s6
  $region1: #{tpu_custom_call.1} parent=0
    #allocation2 [shape = 'u8[8192]{0}', space=vmem, size = 0x2000, scoped, tag = 'input window, operand 0']
    #allocation3 [shape = 's32[2]{0}', space=sflag, size = 0x8, scoped, tag = 'scoped memory for tpu_custom_call.1']
    #allocation4 [shape = 's32[2]{0}', space=sflag, size = 0x8, scoped, tag = 'scoped memory for tpu_custom_call.1']
    #allocation5 [shape = 'u8[16384]{0}', space=vmem, size = 0x4000, scoped, tag = 'input window, operand 1, single buffered']
    #allocation6 [shape = 's32[1]{0}', space=sflag, size = 0x4, scoped, tag = 'scoped memory for tpu_custom_call.1']
    #allocation7 [shape = 'u8[8192]{0}', space=vmem, size = 0x2000, scoped, tag = 'output window, operand 0']
    #allocation8 [shape = 'u8[32768]{0}', space=vmem, size = 0x8000, scoped, tag = 'output window, operand 1']
    #allocation9 [shape = 's32[2]{0}', space=sflag, size = 0x8, scoped, tag = 'scoped memory for tpu_custom_call.1']
    %10 = vsyncpa [#allocation3], 0
    %s11 = scalar_lea.sflag [#allocation3], 1
    %12 = vsyncpa %s11, 0
    %13 = vsyncpa [#allocation6], 0
    %14 = vsyncpa [#allocation4], 0
    %s15 = scalar_lea.sflag [#allocation4], 1
    %16 = vsyncpa %s15, 0
    %17 = vsyncpa [#allocation9], 0
    %s18 = scalar_lea.sflag [#allocation9], 1
    %19 = vsyncpa %s18, 0
    loop: start=0, step=1, limit=4
    $region2: #{tpu_custom_call.1} parent=1 // loop_pre_header
      _
    $region3: #{tpu_custom_call.1} parent=1 // loop_header
      %s21 = sphi 0, %s25
      %p22 = scmp.ge.s32.totalorder %s21, 4
      %s31 = sphi 0, %s33
      %s34 = sphi 0, %s31
      %s35 = sphi 0, %s34
      %s51 = sphi 0, %s35
      %s55 = sphi 0, %s55
      %s57 = sphi 0, %s55
      %s58 = sphi 0, %s57
      %s72 = sphi 0, %s58
      %s76 = sphi 0, %s76
      %s78 = sphi 0, %s76
      %s79 = sphi 0, %s78
      %s93 = sphi 0, %s79
      %s99 = sphi 0, %s101
      %s102 = sphi 0, %s99
      %s103 = sphi 0, %s102
      %s119 = sphi 0, %s103
      %s125 = sphi 0, %s127
      %s128 = sphi 0, %s125
      %s129 = sphi 0, %s128
      %s145 = sphi 0, %s129
    $region4: #{tpu_custom_call.1} parent=1 // loop_header_branch
      %24 = sbr.rel (%p22) target = $region8
    $region5: #{tpu_custom_call.1} parent=1 // loop_body
      %s26 = ssub.s32 %s21, 1
      %s27 = ssub.s32 %s21, 2
      %s28 = sadd.s32 %s21, 1
      %s29 = ssub.s32 %s21, %s28
      %p30 = scmp.eq.s32.totalorder %s29, 0
      %s32 = sadd.s32 %s31, 1
      %s33 = scalar_select %p30, %s31, %s32
      %p36 = pneg %p30
      %p37 = scmp.eq.s32.totalorder %s21, 1
      %p38 = por %p36, %p37
      %p39 = scmp.ne.s32.totalorder %s31, %s34
      %p40 = scmp.eq.s32.totalorder %s21, 0
      %p41 = por %p39, %p40
      %p42 = scmp.ne.s32.totalorder %s31, %s34
      %p43 = scmp.eq.s32.totalorder %s26, 1
      %p44 = por %p42, %p43
      %p45 = scmp.ne.s32.totalorder %s34, %s35
      %p46 = scmp.eq.s32.totalorder %s26, 0
      %p47 = por %p45, %p46
      %p48 = scmp.ne.s32.totalorder %s34, %s35
      %p49 = scmp.eq.s32.totalorder %s27, 1
      %p50 = por %p48, %p49
      %p52 = scmp.ne.s32.totalorder %s35, %s51
      %p53 = scmp.eq.s32.totalorder %s27, 0
      %p54 = por %p52, %p53
      %s56 = sadd.s32 %s55, 1
      %p59 = scmp.eq.s32.totalorder %s21, 1
      %p60 = scmp.ne.s32.totalorder %s55, %s57
      %p61 = scmp.eq.s32.totalorder %s21, 0
      %p62 = por %p60, %p61
      %p63 = scmp.ne.s32.totalorder %s55, %s57
      %p64 = scmp.eq.s32.totalorder %s26, 1
      %p65 = por %p63, %p64
      %p66 = scmp.ne.s32.totalorder %s57, %s58
      %p67 = scmp.eq.s32.totalorder %s26, 0
      %p68 = por %p66, %p67
      %p69 = scmp.ne.s32.totalorder %s57, %s58
      %p70 = scmp.eq.s32.totalorder %s27, 1
      %p71 = por %p69, %p70
      %p73 = scmp.ne.s32.totalorder %s58, %s72
      %p74 = scmp.eq.s32.totalorder %s27, 0
      %p75 = por %p73, %p74
      %s77 = sadd.s32 %s76, 1
      %p80 = scmp.eq.s32.totalorder %s21, 1
      %p81 = scmp.ne.s32.totalorder %s76, %s78
      %p82 = scmp.eq.s32.totalorder %s21, 0
      %p83 = por %p81, %p82
      %p84 = scmp.ne.s32.totalorder %s76, %s78
      %p85 = scmp.eq.s32.totalorder %s26, 1
      %p86 = por %p84, %p85
      %p87 = scmp.ne.s32.totalorder %s78, %s79
      %p88 = scmp.eq.s32.totalorder %s26, 0
      %p89 = por %p87, %p88
      %p90 = scmp.ne.s32.totalorder %s78, %s79
      %p91 = scmp.eq.s32.totalorder %s27, 1
      %p92 = por %p90, %p91
      %p94 = scmp.ne.s32.totalorder %s79, %s93
      %p95 = scmp.eq.s32.totalorder %s27, 0
      %p96 = por %p94, %p95
      %s97 = ssub.s32 %s21, %s28
      %p98 = scmp.eq.s32.totalorder %s97, 0
      %s100 = sadd.s32 %s99, 1
      %s101 = scalar_select %p98, %s99, %s100
      %p104 = pneg %p98
      %p105 = scmp.eq.s32.totalorder %s21, 1
      %p106 = por %p104, %p105
      %p107 = scmp.ne.s32.totalorder %s99, %s102
      %p108 = scmp.eq.s32.totalorder %s21, 0
      %p109 = por %p107, %p108
      %p110 = scmp.ne.s32.totalorder %s99, %s102
      %p111 = scmp.eq.s32.totalorder %s26, 1
      %p112 = por %p110, %p111
      %p113 = scmp.ne.s32.totalorder %s102, %s103
      %p114 = scmp.eq.s32.totalorder %s26, 0
      %p115 = por %p113, %p114
      %p116 = scmp.ne.s32.totalorder %s102, %s103
      %p117 = scmp.eq.s32.totalorder %s27, 1
      %p118 = por %p116, %p117
      %p120 = scmp.ne.s32.totalorder %s103, %s119
      %p121 = scmp.eq.s32.totalorder %s27, 0
      %p122 = por %p120, %p121
      %s123 = ssub.s32 %s21, %s28
      %p124 = scmp.eq.s32.totalorder %s123, 0
      %s126 = sadd.s32 %s125, 1
      %s127 = scalar_select %p124, %s125, %s126
      %p130 = pneg %p124
      %p131 = scmp.eq.s32.totalorder %s21, 1
      %p132 = por %p130, %p131
      %p133 = scmp.ne.s32.totalorder %s125, %s128
      %p134 = scmp.eq.s32.totalorder %s21, 0
      %p135 = por %p133, %p134
      %p136 = scmp.ne.s32.totalorder %s125, %s128
      %p137 = scmp.eq.s32.totalorder %s26, 1
      %p138 = por %p136, %p137
      %p139 = scmp.ne.s32.totalorder %s128, %s129
      %p140 = scmp.eq.s32.totalorder %s26, 0
      %p141 = por %p139, %p140
      %p142 = scmp.ne.s32.totalorder %s128, %s129
      %p143 = scmp.eq.s32.totalorder %s27, 1
      %p144 = por %p142, %p143
      %p146 = scmp.ne.s32.totalorder %s129, %s145
      %p147 = scmp.eq.s32.totalorder %s27, 0
      %p148 = por %p146, %p147
      %p149 = scmp.le.s32.totalorder 1, %s21
      %p150 = scmp.lt.s32.totalorder %s21, 3
      %p151 = pnand %p149, %p150
      %p152 = pneg %p151
      // Predicated region
      $region9: #{tpu_custom_call.1} parent=5 // pred_check
        _
      $region10: #{tpu_custom_call.1} parent=5 // pred_check_branch
        %154 = sbr.rel (%p151) target = $region12
      $region11: #{tpu_custom_call.1} parent=5 // pred_region
        %s155 = ssub.s32 %s21, 1
        // Predicated region
        $region13: #{tpu_custom_call.1} parent=11 // pred_check
          %p156 = pneg %p68
        $region14: #{tpu_custom_call.1} parent=11 // pred_check_branch
          %158 = sbr.rel (%p156) target = $region16
        $region15: #{tpu_custom_call.1} parent=11 // pred_region
          %s160 = ssub.s32 512, 512
          %161 = vsyncadd [#allocation6], %s160
          %s162 = sshll.u32 [#allocation5], 4
          %s163 = int_to_ptr.vmem [resolvable:$true] %s162
          %168 = dma.hbm_to_vmem [thread:$0]  %s1, 512, %s163, [#allocation6], 128, 128, 8
        $region16: #{tpu_custom_call.1} parent=11 // pred_fallthru
          _
        // Predicated region
        $region17: #{tpu_custom_call.1} parent=11 // pred_check
          %p169 = pneg %p89
        $region18: #{tpu_custom_call.1} parent=11 // pred_check_branch
          %171 = sbr.rel (%p169) target = $region20
        $region19: #{tpu_custom_call.1} parent=11 // pred_region
          _
        $region20: #{tpu_custom_call.1} parent=11 // pred_fallthru
          _
      $region12: #{tpu_custom_call.1} parent=5 // pred_fallthru
        _
      %p172 = scmp.lt.s32.totalorder %s21, 2
      // Predicated region
      $region21: #{tpu_custom_call.1} parent=5 // pred_check
        %p173 = pneg %p172
      $region22: #{tpu_custom_call.1} parent=5 // pred_check_branch
        %175 = sbr.rel (%p173) target = $region24
      $region23: #{tpu_custom_call.1} parent=5 // pred_region
        // Predicated region
        $region25: #{tpu_custom_call.1} parent=23 // pred_check
          %p176 = pneg %p41
        $region26: #{tpu_custom_call.1} parent=23 // pred_check_branch
          %178 = sbr.rel (%p176) target = $region28
        $region27: #{tpu_custom_call.1} parent=23 // pred_region
          %s179 = sand.u32 %s31, 1
          %s180 = scalar_lea.sflag [#allocation3], %s179
          %s181 = sand.u32 %s31, 1
          %s182 = smul.addr %s181, 8
          %s183 = scalar_lea.vmem [#allocation2], %s182
          %s185 = ssub.s32 128, 128
          %186 = vsyncadd %s180, %s185
          %s187 = smul.addr %s21, 128
          %s188 = scalar_lea.hbm %s0, %s187
          %s190 = sshll.u32 %s183, 4
          %s191 = int_to_ptr.vmem [resolvable:$true] %s190
          %193 = dma.hbm_to_vmem [thread:$0]  %s188, 128, %s191, %s180
        $region28: #{tpu_custom_call.1} parent=23 // pred_fallthru
          _
      $region24: #{tpu_custom_call.1} parent=5 // pred_fallthru
        _
      %p194 = scmp.le.s32.totalorder 1, %s21
      %p195 = scmp.lt.s32.totalorder %s21, 3
      %p196 = pnand %p194, %p195
      %p197 = pneg %p196
      // Predicated region
      $region29: #{tpu_custom_call.1} parent=5 // pred_check
        _
      $region30: #{tpu_custom_call.1} parent=5 // pred_check_branch
        %199 = sbr.rel (%p196) target = $region32
      $region31: #{tpu_custom_call.1} parent=5 // pred_region
        %s200 = ssub.s32 %s21, 1
        %s201 = sand.u32 %s34, 1
        %s202 = scalar_lea.sflag [#allocation3], %s201
        %s203 = sand.u32 %s34, 1
        %s204 = smul.addr %s203, 8
        %s205 = scalar_lea.vmem [#allocation2], %s204
        // Predicated region
        $region33: #{tpu_custom_call.1} parent=31 // pred_check
          %p206 = pneg %p47
        $region34: #{tpu_custom_call.1} parent=31 // pred_check_branch
          %208 = sbr.rel (%p206) target = $region36
        $region35: #{tpu_custom_call.1} parent=31 // pred_region
          %209 = dma.done %s202, 128
        $region36: #{tpu_custom_call.1} parent=31 // pred_fallthru
          _
        // Predicated region
        $region37: #{tpu_custom_call.1} parent=31 // pred_check
          %p210 = pneg %p68
        $region38: #{tpu_custom_call.1} parent=31 // pred_check_branch
          %212 = sbr.rel (%p210) target = $region40
        $region39: #{tpu_custom_call.1} parent=31 // pred_region
          %213 = dma.done [#allocation6], 512
        $region40: #{tpu_custom_call.1} parent=31 // pred_fallthru
          _
        %s214 = sand.u32 %s34, 1
        %s215 = scalar_lea.sflag [#allocation3], %s214
        %s216 = sand.u32 %s34, 1
        %s217 = smul.addr %s216, 8
        %s218 = scalar_lea.vmem [#allocation2], %s217
        %p219 = pneg %p47
        %p220 = pneg %p44
        %p221 = pneg %p68
        %p222 = pneg %p65
        %p223 = pneg %p89
        %p224 = pneg %p86
        %p225 = pneg %p115
        %p226 = pneg %p112
        %s227 = sand.u32 %s102, 1
        %s228 = scalar_lea.sflag [#allocation4], %s227
        %s229 = sand.u32 %s102, 1
        %s230 = smul.addr %s229, 8
        %s231 = scalar_lea.vmem [#allocation7], %s230
        %p232 = pneg %p141
        %p233 = pneg %p138
        %s234 = sand.u32 %s128, 1
        %s235 = scalar_lea.sflag [#allocation9], %s234
        %s236 = sand.u32 %s128, 1
        %s237 = smul.addr %s236, 32
        %s238 = scalar_lea.vmem [#allocation8], %s237
        %v239 = vld [vmem:[%s205] sm:$0xff]
        %v240 = vld [vmem:[#allocation5] sm:$0xff]
        %v241 = vld [vmem:[#allocation5 + $0x8] sm:$0xff]
        %v242 = vld [vmem:[#allocation5 + $0x10] sm:$0xff]
        %v243 = vld [vmem:[#allocation5 + $0x18] sm:$0xff]
        %v244 = vld [vmem:[%s2] sm:$0x1]
        %v246 = vlaneseq
        %v247 = vshrl.u32 %v246, 7
        %v248 = vsub.s32 0, %v247
        %v249 = vrot.slane %v244, %v248
        %vm251 = vcmask 261120
        %v253 = vsel %vm251, %v239, 0
        %255 = vmatprep.subr.mxu0 0.0
        %256 = vmatpush1.msra.mxu0 %v240
        %257 = vmatprep.subr.mxu0 0.0
        %258 = vmatpush1.msra.mxu0 %v241
        %259 = vmatprep.subr.mxu0 0.0
        %260 = vmatpush1.msra.mxu0 %v242
        %261 = vmatprep.subr.mxu0 0.0
        %262 = vmatpush1.msra.mxu0 %v243
        %263 = vmatprep.subr.mxu0 0.0
        %264 = vmatpush1.msra.mxu0 0.0
        %265 = vmatprep.subr.mxu0 0.0
        %266 = vmatpush1.msra.mxu0 0.0
        %267 = vmatprep.subr.mxu0 0.0
        %268 = vmatpush1.msra.mxu0 0.0
        %269 = vmatprep.subr.mxu0 0.0
        %270 = vmatpush1.msra.mxu0 0.0
        %271 = vmatprep.subr.mxu0 0.0
        %272 = vmatpush1.msra.mxu0 0.0
        %273 = vmatprep.subr.mxu0 0.0
        %274 = vmatpush1.msra.mxu0 0.0
        %275 = vmatprep.subr.mxu0 0.0
        %276 = vmatpush1.msra.mxu0 0.0
        %277 = vmatprep.subr.mxu0 0.0
        %278 = vmatpush1.msra.mxu0 0.0
        %279 = vmatprep.subr.mxu0 0.0
        %280 = vmatpush1.msra.mxu0 0.0
        %281 = vmatprep.subr.mxu0 0.0
        %282 = vmatpush1.msra.mxu0 0.0
        %283 = vmatprep.subr.mxu0 0.0
        %284 = vmatpush1.msra.mxu0 0.0
        %285 = vmatprep.subr.mxu0 0.0
        %286 = vmatpush1.msra.mxu0 0.0
        %287 = vmatprep.subr.mxu0 0.0
        %288 = vmatpush1.msra.mxu0 0.0
        %289 = vmatprep.subr.mxu0 0.0
        %290 = vmatpush1.msra.mxu0 0.0
        %291 = vmatprep.subr.mxu0 0.0
        %292 = vmatpush1.msra.mxu0 0.0
        %293 = vmatprep.subr.mxu0 0.0
        %294 = vmatpush1.msra.mxu0 0.0
        %295 = vmatprep.subr.mxu0 0.0
        %296 = vmatpush1.msra.mxu0 0.0
        %297 = vmatprep.subr.mxu0 0.0
        %298 = vmatpush1.msra.mxu0 0.0
        %299 = vmatprep.subr.mxu0 0.0
        %300 = vmatpush1.msra.mxu0 0.0
        %301 = vmatprep.subr.mxu0 0.0
        %302 = vmatpush1.msra.mxu0 0.0
        %303 = vmatprep.subr.mxu0 0.0
        %304 = vmatpush1.msra.mxu0 0.0
        %305 = vmatprep.subr.mxu0 0.0
        %306 = vmatpush1.msra.mxu0 0.0
        %307 = vmatprep.subr.mxu0 0.0
        %308 = vmatpush1.msra.mxu0 0.0
        %309 = vmatprep.subr.mxu0 0.0
        %310 = vmatpush1.msra.mxu0 0.0
        %311 = vmatprep.subr.mxu0 0.0
        %312 = vmatpush1.msra.mxu0 0.0
        %313 = vmatprep.subr.mxu0 0.0
        %314 = vmatpush1.msra.mxu0 0.0
        %315 = vmatprep.subr.mxu0 0.0
        %316 = vmatpush1.msra.mxu0 0.0
        %317 = vmatprep.subr.mxu0 0.0
        %318 = vmatpush1.msra.mxu0 0.0
        %319 = vmatprep.mubr.f32.mxu0 0.0
        %320 = vmatmul.mubr.f32.gmra.mrb[0].mxu0 %v253
        %v321 = vpop.f32.mrb[0].mxu0
        %v322 = vadd.f32 %v249, %v321
        %v323 = vpop.f32.mrb[0].mxu0
        %324 = vdwg.mxu0
        %326 = vrot.lane.b32.xlu0 %v322, 96
        %v327 = vpop.permute.xlu0 %326
        %vm328 = vcmask 64512
        %v329 = vsel %vm328, %v322, 0
        %v331 = vsel %vm328, %v327, 0
        %333 = vmatprep.subr.mxu0 0.0
        %334 = vmatpush1.xpose.msra.mxu0 %v331
        %335 = vmatprep.subr.mxu0 0.0
        %336 = vmatpush1.xpose.msra.mxu0 0.0
        %337 = vmatprep.subr.mxu0 0.0
        %338 = vmatpush1.xpose.msra.mxu0 0.0
        %339 = vmatprep.subr.mxu0 0.0
        %340 = vmatpush1.xpose.msra.mxu0 0.0
        %341 = vmatprep.subr.mxu0 0.0
        %342 = vmatpush1.xpose.msra.mxu0 0.0
        %343 = vmatprep.subr.mxu0 0.0
        %344 = vmatpush1.xpose.msra.mxu0 0.0
        %345 = vmatprep.subr.mxu0 0.0
        %346 = vmatpush1.xpose.msra.mxu0 0.0
        %347 = vmatprep.subr.mxu0 0.0
        %348 = vmatpush1.xpose.msra.mxu0 0.0
        %349 = vmatprep.subr.mxu0 0.0
        %350 = vmatpush1.xpose.msra.mxu0 0.0
        %351 = vmatprep.subr.mxu0 0.0
        %352 = vmatpush1.xpose.msra.mxu0 0.0
        %353 = vmatprep.subr.mxu0 0.0
        %354 = vmatpush1.xpose.msra.mxu0 0.0
        %355 = vmatprep.subr.mxu0 0.0
        %356 = vmatpush1.xpose.msra.mxu0 0.0
        %357 = vmatprep.subr.mxu0 0.0
        %358 = vmatpush1.xpose.msra.mxu0 0.0
        %359 = vmatprep.subr.mxu0 0.0
        %360 = vmatpush1.xpose.msra.mxu0 0.0
        %361 = vmatprep.subr.mxu0 0.0
        %362 = vmatpush1.xpose.msra.mxu0 0.0
        %363 = vmatprep.subr.mxu0 0.0
        %364 = vmatpush1.xpose.msra.mxu0 0.0
        %365 = vmatprep.subr.mxu0 0.0
        %366 = vmatpush1.xpose.msra.mxu0 0.0
        %367 = vmatprep.subr.mxu0 0.0
        %368 = vmatpush1.xpose.msra.mxu0 0.0
        %369 = vmatprep.subr.mxu0 0.0
        %370 = vmatpush1.xpose.msra.mxu0 0.0
        %371 = vmatprep.subr.mxu0 0.0
        %372 = vmatpush1.xpose.msra.mxu0 0.0
        %373 = vmatprep.subr.mxu0 0.0
        %374 = vmatpush1.xpose.msra.mxu0 0.0
        %375 = vmatprep.subr.mxu0 0.0
        %376 = vmatpush1.xpose.msra.mxu0 0.0
        %377 = vmatprep.subr.mxu0 0.0
        %378 = vmatpush1.xpose.msra.mxu0 0.0
        %379 = vmatprep.subr.mxu0 0.0
        %380 = vmatpush1.xpose.msra.mxu0 0.0
        %381 = vmatprep.subr.mxu0 0.0
        %382 = vmatpush1.xpose.msra.mxu0 0.0
        %383 = vmatprep.subr.mxu0 0.0
        %384 = vmatpush1.xpose.msra.mxu0 0.0
        %385 = vmatprep.subr.mxu0 0.0
        %386 = vmatpush1.xpose.msra.mxu0 0.0
        %387 = vmatprep.subr.mxu0 0.0
        %388 = vmatpush1.xpose.msra.mxu0 0.0
        %389 = vmatprep.subr.mxu0 0.0
        %390 = vmatpush1.xpose.msra.mxu0 0.0
        %391 = vmatprep.subr.mxu0 0.0
        %392 = vmatpush1.xpose.msra.mxu0 0.0
        %393 = vmatprep.subr.mxu0 0.0
        %394 = vmatpush1.xpose.msra.mxu0 0.0
        %395 = vmatprep.subr.mxu0 0.0
        %396 = vmatpush1.xpose.msra.mxu0 0.0
        %397 = vmatprep.mubr.f32.mxu0 0.0
        %398 = vmatmul.mubr.f32.gmra.mrb[0].mxu0 %v329
        %v399 = vpop.f32.mrb[0].mxu0
        %v400 = vadd.f32 0.0, %v399
        %v401 = vpop.f32.mrb[0].mxu0
        %402 = vdwg.mxu0
        %v403 = vmul.f32 %v400, 0.35355338
        %v404 = vsel %vm328, %v403, -inf
        %405 = vmax.xlane.f32.xlu0 %v404
        %v406 = vpop.xlane.xlu0 %405
        %v407 = vsub.f32 %v403, %v406
        %v408 = vmul.f32 %v407, 1.442695
        %v409 = vpow.pop %v408
        %v410 = vsel %vm328, %v409, 0.0
        %411 = vadd.xlane.f32.xlu0 %v410
        %v412 = vpop.xlane.xlu0 %411
        %v413 = vrcp.pop %v412
        %v414 = vmul.f32 %v409, %v413
        %415 = vst.msk [vmem:[%s238] sm:$0xff] %vm328, %v414
        %416 = vrot.lane.b32.xlu0 %v322, 64
        %v417 = vpop.permute.xlu0 %416
        %v420 = vsel %vm328, %v414, 0
        %422 = vmatprep.subr.mxu0 0.0
        %423 = vmatpush1.msra.mxu0 %v417
        %424 = vmatprep.subr.mxu0 0.0
        %425 = vmatpush1.msra.mxu0 0.0
        %426 = vmatprep.subr.mxu0 0.0
        %427 = vmatpush1.msra.mxu0 0.0
        %428 = vmatprep.subr.mxu0 0.0
        %429 = vmatpush1.msra.mxu0 0.0
        %430 = vmatprep.subr.mxu0 0.0
        %431 = vmatpush1.msra.mxu0 0.0
        %432 = vmatprep.subr.mxu0 0.0
        %433 = vmatpush1.msra.mxu0 0.0
        %434 = vmatprep.subr.mxu0 0.0
        %435 = vmatpush1.msra.mxu0 0.0
        %436 = vmatprep.subr.mxu0 0.0
        %437 = vmatpush1.msra.mxu0 0.0
        %438 = vmatprep.subr.mxu0 0.0
        %439 = vmatpush1.msra.mxu0 0.0
        %440 = vmatprep.subr.mxu0 0.0
        %441 = vmatpush1.msra.mxu0 0.0
        %442 = vmatprep.subr.mxu0 0.0
        %443 = vmatpush1.msra.mxu0 0.0
        %444 = vmatprep.subr.mxu0 0.0
        %445 = vmatpush1.msra.mxu0 0.0
        %446 = vmatprep.subr.mxu0 0.0
        %447 = vmatpush1.msra.mxu0 0.0
        %448 = vmatprep.subr.mxu0 0.0
        %449 = vmatpush1.msra.mxu0 0.0
        %450 = vmatprep.subr.mxu0 0.0
        %451 = vmatpush1.msra.mxu0 0.0
        %452 = vmatprep.subr.mxu0 0.0
        %453 = vmatpush1.msra.mxu0 0.0
        %454 = vmatprep.subr.mxu0 0.0
        %455 = vmatpush1.msra.mxu0 0.0
        %456 = vmatprep.subr.mxu0 0.0
        %457 = vmatpush1.msra.mxu0 0.0
        %458 = vmatprep.subr.mxu0 0.0
        %459 = vmatpush1.msra.mxu0 0.0
        %460 = vmatprep.subr.mxu0 0.0
        %461 = vmatpush1.msra.mxu0 0.0
        %462 = vmatprep.subr.mxu0 0.0
        %463 = vmatpush1.msra.mxu0 0.0
        %464 = vmatprep.subr.mxu0 0.0
        %465 = vmatpush1.msra.mxu0 0.0
        %466 = vmatprep.subr.mxu0 0.0
        %467 = vmatpush1.msra.mxu0 0.0
        %468 = vmatprep.subr.mxu0 0.0
        %469 = vmatpush1.msra.mxu0 0.0
        %470 = vmatprep.subr.mxu0 0.0
        %471 = vmatpush1.msra.mxu0 0.0
        %472 = vmatprep.subr.mxu0 0.0
        %473 = vmatpush1.msra.mxu0 0.0
        %474 = vmatprep.subr.mxu0 0.0
        %475 = vmatpush1.msra.mxu0 0.0
        %476 = vmatprep.subr.mxu0 0.0
        %477 = vmatpush1.msra.mxu0 0.0
        %478 = vmatprep.subr.mxu0 0.0
        %479 = vmatpush1.msra.mxu0 0.0
        %480 = vmatprep.subr.mxu0 0.0
        %481 = vmatpush1.msra.mxu0 0.0
        %482 = vmatprep.subr.mxu0 0.0
        %483 = vmatpush1.msra.mxu0 0.0
        %484 = vmatprep.subr.mxu0 0.0
        %485 = vmatpush1.msra.mxu0 0.0
        %486 = vmatprep.mubr.f32.mxu0 0.0
        %487 = vmatmul.mubr.f32.gmra.mrb[0].mxu0 %v420
        %v488 = vpop.f32.mrb[0].mxu0
        %v489 = vadd.f32 0.0, %v488
        %v490 = vpop.f32.mrb[0].mxu0
        %491 = vdwg.mxu0
        %492 = vst.msk [vmem:[%s231] sm:$0xff] %vm328, %v489
        %493 = vrot.lane.b32.xlu0 %v322, 120
        %v494 = vpop.permute.xlu0 %493
        %495 = vrot.lane.b32.xlu0 %v322, 88
        %v496 = vpop.permute.xlu0 %495
        %v497 = vsel %vm328, %v494, 0
        %v499 = vsel %vm328, %v496, 0
        %501 = vmatprep.subr.mxu0 0.0
        %502 = vmatpush1.xpose.msra.mxu0 %v499
        %503 = vmatprep.subr.mxu0 0.0
        %504 = vmatpush1.xpose.msra.mxu0 0.0
        %505 = vmatprep.subr.mxu0 0.0
        %506 = vmatpush1.xpose.msra.mxu0 0.0
        %507 = vmatprep.subr.mxu0 0.0
        %508 = vmatpush1.xpose.msra.mxu0 0.0
        %509 = vmatprep.subr.mxu0 0.0
        %510 = vmatpush1.xpose.msra.mxu0 0.0
        %511 = vmatprep.subr.mxu0 0.0
        %512 = vmatpush1.xpose.msra.mxu0 0.0
        %513 = vmatprep.subr.mxu0 0.0
        %514 = vmatpush1.xpose.msra.mxu0 0.0
        %515 = vmatprep.subr.mxu0 0.0
        %516 = vmatpush1.xpose.msra.mxu0 0.0
        %517 = vmatprep.subr.mxu0 0.0
        %518 = vmatpush1.xpose.msra.mxu0 0.0
        %519 = vmatprep.subr.mxu0 0.0
        %520 = vmatpush1.xpose.msra.mxu0 0.0
        %521 = vmatprep.subr.mxu0 0.0
        %522 = vmatpush1.xpose.msra.mxu0 0.0
        %523 = vmatprep.subr.mxu0 0.0
        %524 = vmatpush1.xpose.msra.mxu0 0.0
        %525 = vmatprep.subr.mxu0 0.0
        %526 = vmatpush1.xpose.msra.mxu0 0.0
        %527 = vmatprep.subr.mxu0 0.0
        %528 = vmatpush1.xpose.msra.mxu0 0.0
        %529 = vmatprep.subr.mxu0 0.0
        %530 = vmatpush1.xpose.msra.mxu0 0.0
        %531 = vmatprep.subr.mxu0 0.0
        %532 = vmatpush1.xpose.msra.mxu0 0.0
        %533 = vmatprep.subr.mxu0 0.0
        %534 = vmatpush1.xpose.msra.mxu0 0.0
        %535 = vmatprep.subr.mxu0 0.0
        %536 = vmatpush1.xpose.msra.mxu0 0.0
        %537 = vmatprep.subr.mxu0 0.0
        %538 = vmatpush1.xpose.msra.mxu0 0.0
        %539 = vmatprep.subr.mxu0 0.0
        %540 = vmatpush1.xpose.msra.mxu0 0.0
        %541 = vmatprep.subr.mxu0 0.0
        %542 = vmatpush1.xpose.msra.mxu0 0.0
        %543 = vmatprep.subr.mxu0 0.0
        %544 = vmatpush1.xpose.msra.mxu0 0.0
        %545 = vmatprep.subr.mxu0 0.0
        %546 = vmatpush1.xpose.msra.mxu0 0.0
        %547 = vmatprep.subr.mxu0 0.0
        %548 = vmatpush1.xpose.msra.mxu0 0.0
        %549 = vmatprep.subr.mxu0 0.0
        %550 = vmatpush1.xpose.msra.mxu0 0.0
        %551 = vmatprep.subr.mxu0 0.0
        %552 = vmatpush1.xpose.msra.mxu0 0.0
        %553 = vmatprep.subr.mxu0 0.0
        %554 = vmatpush1.xpose.msra.mxu0 0.0
        %555 = vmatprep.subr.mxu0 0.0
        %556 = vmatpush1.xpose.msra.mxu0 0.0
        %557 = vmatprep.subr.mxu0 0.0
        %558 = vmatpush1.xpose.msra.mxu0 0.0
        %559 = vmatprep.subr.mxu0 0.0
        %560 = vmatpush1.xpose.msra.mxu0 0.0
        %561 = vmatprep.subr.mxu0 0.0
        %562 = vmatpush1.xpose.msra.mxu0 0.0
        %563 = vmatprep.subr.mxu0 0.0
        %564 = vmatpush1.xpose.msra.mxu0 0.0
        %565 = vmatprep.mubr.f32.mxu0 0.0
        %566 = vmatmul.mubr.f32.gmra.mrb[0].mxu0 %v497
        %v567 = vpop.f32.mrb[0].mxu0
        %v568 = vadd.f32 0.0, %v567
        %v569 = vpop.f32.mrb[0].mxu0
        %570 = vdwg.mxu0
        %v571 = vmul.f32 %v568, 0.35355338
        %v572 = vsel %vm328, %v571, -inf
        %573 = vmax.xlane.f32.xlu0 %v572
        %v574 = vpop.xlane.xlu0 %573
        %v575 = vsub.f32 %v571, %v574
        %v576 = vmul.f32 %v575, 1.442695
        %v577 = vpow.pop %v576
        %v578 = vsel %vm328, %v577, 0.0
        %579 = vadd.xlane.f32.xlu0 %v578
        %v580 = vpop.xlane.xlu0 %579
        %v581 = vrcp.pop %v580
        %v582 = vmul.f32 %v577, %v581
        %s583 = scalar_lea.vmem %s238, 8 [#allocation8]
        %584 = vst.msk [vmem:[%s583] sm:$0xff] %vm328, %v582
        %585 = vrot.lane.b32.xlu0 %v322, 56
        %v586 = vpop.permute.xlu0 %585
        %v589 = vsel %vm328, %v582, 0
        %591 = vmatprep.subr.mxu0 0.0
        %592 = vmatpush1.msra.mxu0 %v586
        %593 = vmatprep.subr.mxu0 0.0
        %594 = vmatpush1.msra.mxu0 0.0
        %595 = vmatprep.subr.mxu0 0.0
        %596 = vmatpush1.msra.mxu0 0.0
        %597 = vmatprep.subr.mxu0 0.0
        %598 = vmatpush1.msra.mxu0 0.0
        %599 = vmatprep.subr.mxu0 0.0
        %600 = vmatpush1.msra.mxu0 0.0
        %601 = vmatprep.subr.mxu0 0.0
        %602 = vmatpush1.msra.mxu0 0.0
        %603 = vmatprep.subr.mxu0 0.0
        %604 = vmatpush1.msra.mxu0 0.0
        %605 = vmatprep.subr.mxu0 0.0
        %606 = vmatpush1.msra.mxu0 0.0
        %607 = vmatprep.subr.mxu0 0.0
        %608 = vmatpush1.msra.mxu0 0.0
        %609 = vmatprep.subr.mxu0 0.0
        %610 = vmatpush1.msra.mxu0 0.0
        %611 = vmatprep.subr.mxu0 0.0
        %612 = vmatpush1.msra.mxu0 0.0
        %613 = vmatprep.subr.mxu0 0.0
        %614 = vmatpush1.msra.mxu0 0.0
        %615 = vmatprep.subr.mxu0 0.0
        %616 = vmatpush1.msra.mxu0 0.0
        %617 = vmatprep.subr.mxu0 0.0
        %618 = vmatpush1.msra.mxu0 0.0
        %619 = vmatprep.subr.mxu0 0.0
        %620 = vmatpush1.msra.mxu0 0.0
        %621 = vmatprep.subr.mxu0 0.0
        %622 = vmatpush1.msra.mxu0 0.0
        %623 = vmatprep.subr.mxu0 0.0
        %624 = vmatpush1.msra.mxu0 0.0
        %625 = vmatprep.subr.mxu0 0.0
        %626 = vmatpush1.msra.mxu0 0.0
        %627 = vmatprep.subr.mxu0 0.0
        %628 = vmatpush1.msra.mxu0 0.0
        %629 = vmatprep.subr.mxu0 0.0
        %630 = vmatpush1.msra.mxu0 0.0
        %631 = vmatprep.subr.mxu0 0.0
        %632 = vmatpush1.msra.mxu0 0.0
        %633 = vmatprep.subr.mxu0 0.0
        %634 = vmatpush1.msra.mxu0 0.0
        %635 = vmatprep.subr.mxu0 0.0
        %636 = vmatpush1.msra.mxu0 0.0
        %637 = vmatprep.subr.mxu0 0.0
        %638 = vmatpush1.msra.mxu0 0.0
        %639 = vmatprep.subr.mxu0 0.0
        %640 = vmatpush1.msra.mxu0 0.0
        %641 = vmatprep.subr.mxu0 0.0
        %642 = vmatpush1.msra.mxu0 0.0
        %643 = vmatprep.subr.mxu0 0.0
        %644 = vmatpush1.msra.mxu0 0.0
        %645 = vmatprep.subr.mxu0 0.0
        %646 = vmatpush1.msra.mxu0 0.0
        %647 = vmatprep.subr.mxu0 0.0
        %648 = vmatpush1.msra.mxu0 0.0
        %649 = vmatprep.subr.mxu0 0.0
        %650 = vmatpush1.msra.mxu0 0.0
        %651 = vmatprep.subr.mxu0 0.0
        %652 = vmatpush1.msra.mxu0 0.0
        %653 = vmatprep.subr.mxu0 0.0
        %654 = vmatpush1.msra.mxu0 0.0
        %655 = vmatprep.mubr.f32.mxu0 0.0
        %656 = vmatmul.mubr.f32.gmra.mrb[0].mxu0 %v589
        %v657 = vpop.f32.mrb[0].mxu0
        %v658 = vadd.f32 0.0, %v657
        %v659 = vpop.f32.mrb[0].mxu0
        %660 = vdwg.mxu0
        %662 = vrot.lane.b32.xlu0 %v658, 8
        %v663 = vpop.permute.xlu0 %662
        %vm665 = vcmask 130112
        %666 = vst.msk [vmem:[%s231] sm:$0xff] %vm665, %v663
        %667 = vrot.lane.b32.xlu0 %v322, 112
        %v668 = vpop.permute.xlu0 %667
        %669 = vrot.lane.b32.xlu0 %v322, 80
        %v670 = vpop.permute.xlu0 %669
        %v671 = vsel %vm328, %v668, 0
        %v673 = vsel %vm328, %v670, 0
        %675 = vmatprep.subr.mxu0 0.0
        %676 = vmatpush1.xpose.msra.mxu0 %v673
        %677 = vmatprep.subr.mxu0 0.0
        %678 = vmatpush1.xpose.msra.mxu0 0.0
        %679 = vmatprep.subr.mxu0 0.0
        %680 = vmatpush1.xpose.msra.mxu0 0.0
        %681 = vmatprep.subr.mxu0 0.0
        %682 = vmatpush1.xpose.msra.mxu0 0.0
        %683 = vmatprep.subr.mxu0 0.0
        %684 = vmatpush1.xpose.msra.mxu0 0.0
        %685 = vmatprep.subr.mxu0 0.0
        %686 = vmatpush1.xpose.msra.mxu0 0.0
        %687 = vmatprep.subr.mxu0 0.0
        %688 = vmatpush1.xpose.msra.mxu0 0.0
        %689 = vmatprep.subr.mxu0 0.0
        %690 = vmatpush1.xpose.msra.mxu0 0.0
        %691 = vmatprep.subr.mxu0 0.0
        %692 = vmatpush1.xpose.msra.mxu0 0.0
        %693 = vmatprep.subr.mxu0 0.0
        %694 = vmatpush1.xpose.msra.mxu0 0.0
        %695 = vmatprep.subr.mxu0 0.0
        %696 = vmatpush1.xpose.msra.mxu0 0.0
        %697 = vmatprep.subr.mxu0 0.0
        %698 = vmatpush1.xpose.msra.mxu0 0.0
        %699 = vmatprep.subr.mxu0 0.0
        %700 = vmatpush1.xpose.msra.mxu0 0.0
        %701 = vmatprep.subr.mxu0 0.0
        %702 = vmatpush1.xpose.msra.mxu0 0.0
        %703 = vmatprep.subr.mxu0 0.0
        %704 = vmatpush1.xpose.msra.mxu0 0.0
        %705 = vmatprep.subr.mxu0 0.0
        %706 = vmatpush1.xpose.msra.mxu0 0.0
        %707 = vmatprep.subr.mxu0 0.0
        %708 = vmatpush1.xpose.msra.mxu0 0.0
        %709 = vmatprep.subr.mxu0 0.0
        %710 = vmatpush1.xpose.msra.mxu0 0.0
        %711 = vmatprep.subr.mxu0 0.0
        %712 = vmatpush1.xpose.msra.mxu0 0.0
        %713 = vmatprep.subr.mxu0 0.0
        %714 = vmatpush1.xpose.msra.mxu0 0.0
        %715 = vmatprep.subr.mxu0 0.0
        %716 = vmatpush1.xpose.msra.mxu0 0.0
        %717 = vmatprep.subr.mxu0 0.0
        %718 = vmatpush1.xpose.msra.mxu0 0.0
        %719 = vmatprep.subr.mxu0 0.0
        %720 = vmatpush1.xpose.msra.mxu0 0.0
        %721 = vmatprep.subr.mxu0 0.0
        %722 = vmatpush1.xpose.msra.mxu0 0.0
        %723 = vmatprep.subr.mxu0 0.0
        %724 = vmatpush1.xpose.msra.mxu0 0.0
        %725 = vmatprep.subr.mxu0 0.0
        %726 = vmatpush1.xpose.msra.mxu0 0.0
        %727 = vmatprep.subr.mxu0 0.0
        %728 = vmatpush1.xpose.msra.mxu0 0.0
        %729 = vmatprep.subr.mxu0 0.0
        %730 = vmatpush1.xpose.msra.mxu0 0.0
        %731 = vmatprep.subr.mxu0 0.0
        %732 = vmatpush1.xpose.msra.mxu0 0.0
        %733 = vmatprep.subr.mxu0 0.0
        %734 = vmatpush1.xpose.msra.mxu0 0.0
        %735 = vmatprep.subr.mxu0 0.0
        %736 = vmatpush1.xpose.msra.mxu0 0.0
        %737 = vmatprep.subr.mxu0 0.0
        %738 = vmatpush1.xpose.msra.mxu0 0.0
        %739 = vmatprep.mubr.f32.mxu0 0.0
        %740 = vmatmul.mubr.f32.gmra.mrb[0].mxu0 %v671
        %v741 = vpop.f32.mrb[0].mxu0
        %v742 = vadd.f32 0.0, %v741
        %v743 = vpop.f32.mrb[0].mxu0
        %744 = vdwg.mxu0
        %v745 = vmul.f32 %v742, 0.35355338
        %v746 = vsel %vm328, %v745, -inf
        %747 = vmax.xlane.f32.xlu0 %v746
        %v748 = vpop.xlane.xlu0 %747
        %v749 = vsub.f32 %v745, %v748
        %v750 = vmul.f32 %v749, 1.442695
        %v751 = vpow.pop %v750
        %v752 = vsel %vm328, %v751, 0.0
        %753 = vadd.xlane.f32.xlu0 %v752
        %v754 = vpop.xlane.xlu0 %753
        %v755 = vrcp.pop %v754
        %v756 = vmul.f32 %v751, %v755
        %s757 = scalar_lea.vmem %s238, 16 [#allocation8]
        %758 = vst.msk [vmem:[%s757] sm:$0xff] %vm328, %v756
        %759 = vrot.lane.b32.xlu0 %v322, 48
        %v760 = vpop.permute.xlu0 %759
        %v763 = vsel %vm328, %v756, 0
        %765 = vmatprep.subr.mxu0 0.0
        %766 = vmatpush1.msra.mxu0 %v760
        %767 = vmatprep.subr.mxu0 0.0
        %768 = vmatpush1.msra.mxu0 0.0
        %769 = vmatprep.subr.mxu0 0.0
        %770 = vmatpush1.msra.mxu0 0.0
        %771 = vmatprep.subr.mxu0 0.0
        %772 = vmatpush1.msra.mxu0 0.0
        %773 = vmatprep.subr.mxu0 0.0
        %774 = vmatpush1.msra.mxu0 0.0
        %775 = vmatprep.subr.mxu0 0.0
        %776 = vmatpush1.msra.mxu0 0.0
        %777 = vmatprep.subr.mxu0 0.0
        %778 = vmatpush1.msra.mxu0 0.0
        %779 = vmatprep.subr.mxu0 0.0
        %780 = vmatpush1.msra.mxu0 0.0
        %781 = vmatprep.subr.mxu0 0.0
        %782 = vmatpush1.msra.mxu0 0.0
        %783 = vmatprep.subr.mxu0 0.0
        %784 = vmatpush1.msra.mxu0 0.0
        %785 = vmatprep.subr.mxu0 0.0
        %786 = vmatpush1.msra.mxu0 0.0
        %787 = vmatprep.subr.mxu0 0.0
        %788 = vmatpush1.msra.mxu0 0.0
        %789 = vmatprep.subr.mxu0 0.0
        %790 = vmatpush1.msra.mxu0 0.0
        %791 = vmatprep.subr.mxu0 0.0
        %792 = vmatpush1.msra.mxu0 0.0
        %793 = vmatprep.subr.mxu0 0.0
        %794 = vmatpush1.msra.mxu0 0.0
        %795 = vmatprep.subr.mxu0 0.0
        %796 = vmatpush1.msra.mxu0 0.0
        %797 = vmatprep.subr.mxu0 0.0
        %798 = vmatpush1.msra.mxu0 0.0
        %799 = vmatprep.subr.mxu0 0.0
        %800 = vmatpush1.msra.mxu0 0.0
        %801 = vmatprep.subr.mxu0 0.0
        %802 = vmatpush1.msra.mxu0 0.0
        %803 = vmatprep.subr.mxu0 0.0
        %804 = vmatpush1.msra.mxu0 0.0
        %805 = vmatprep.subr.mxu0 0.0
        %806 = vmatpush1.msra.mxu0 0.0
        %807 = vmatprep.subr.mxu0 0.0
        %808 = vmatpush1.msra.mxu0 0.0
        %809 = vmatprep.subr.mxu0 0.0
        %810 = vmatpush1.msra.mxu0 0.0
        %811 = vmatprep.subr.mxu0 0.0
        %812 = vmatpush1.msra.mxu0 0.0
        %813 = vmatprep.subr.mxu0 0.0
        %814 = vmatpush1.msra.mxu0 0.0
        %815 = vmatprep.subr.mxu0 0.0
        %816 = vmatpush1.msra.mxu0 0.0
        %817 = vmatprep.subr.mxu0 0.0
        %818 = vmatpush1.msra.mxu0 0.0
        %819 = vmatprep.subr.mxu0 0.0
        %820 = vmatpush1.msra.mxu0 0.0
        %821 = vmatprep.subr.mxu0 0.0
        %822 = vmatpush1.msra.mxu0 0.0
        %823 = vmatprep.subr.mxu0 0.0
        %824 = vmatpush1.msra.mxu0 0.0
        %825 = vmatprep.subr.mxu0 0.0
        %826 = vmatpush1.msra.mxu0 0.0
        %827 = vmatprep.subr.mxu0 0.0
        %828 = vmatpush1.msra.mxu0 0.0
        %829 = vmatprep.mubr.f32.mxu0 0.0
        %830 = vmatmul.mubr.f32.gmra.mrb[0].mxu0 %v763
        %v831 = vpop.f32.mrb[0].mxu0
        %v832 = vadd.f32 0.0, %v831
        %v833 = vpop.f32.mrb[0].mxu0
        %834 = vdwg.mxu0
        %836 = vrot.lane.b32.xlu0 %v832, 16
        %v837 = vpop.permute.xlu0 %836
        %vm839 = vcmask 195712
        %840 = vst.msk [vmem:[%s231] sm:$0xff] %vm839, %v837
        %841 = vrot.lane.b32.xlu0 %v322, 104
        %v842 = vpop.permute.xlu0 %841
        %843 = vrot.lane.b32.xlu0 %v322, 72
        %v844 = vpop.permute.xlu0 %843
        %v845 = vsel %vm328, %v842, 0
        %v847 = vsel %vm328, %v844, 0
        %849 = vmatprep.subr.mxu0 0.0
        %850 = vmatpush1.xpose.msra.mxu0 %v847
        %851 = vmatprep.subr.mxu0 0.0
        %852 = vmatpush1.xpose.msra.mxu0 0.0
        %853 = vmatprep.subr.mxu0 0.0
        %854 = vmatpush1.xpose.msra.mxu0 0.0
        %855 = vmatprep.subr.mxu0 0.0
        %856 = vmatpush1.xpose.msra.mxu0 0.0
        %857 = vmatprep.subr.mxu0 0.0
        %858 = vmatpush1.xpose.msra.mxu0 0.0
        %859 = vmatprep.subr.mxu0 0.0
        %860 = vmatpush1.xpose.msra.mxu0 0.0
        %861 = vmatprep.subr.mxu0 0.0
        %862 = vmatpush1.xpose.msra.mxu0 0.0
        %863 = vmatprep.subr.mxu0 0.0
        %864 = vmatpush1.xpose.msra.mxu0 0.0
        %865 = vmatprep.subr.mxu0 0.0
        %866 = vmatpush1.xpose.msra.mxu0 0.0
        %867 = vmatprep.subr.mxu0 0.0
        %868 = vmatpush1.xpose.msra.mxu0 0.0
        %869 = vmatprep.subr.mxu0 0.0
        %870 = vmatpush1.xpose.msra.mxu0 0.0
        %871 = vmatprep.subr.mxu0 0.0
        %872 = vmatpush1.xpose.msra.mxu0 0.0
        %873 = vmatprep.subr.mxu0 0.0
        %874 = vmatpush1.xpose.msra.mxu0 0.0
        %875 = vmatprep.subr.mxu0 0.0
        %876 = vmatpush1.xpose.msra.mxu0 0.0
        %877 = vmatprep.subr.mxu0 0.0
        %878 = vmatpush1.xpose.msra.mxu0 0.0
        %879 = vmatprep.subr.mxu0 0.0
        %880 = vmatpush1.xpose.msra.mxu0 0.0
        %881 = vmatprep.subr.mxu0 0.0
        %882 = vmatpush1.xpose.msra.mxu0 0.0
        %883 = vmatprep.subr.mxu0 0.0
        %884 = vmatpush1.xpose.msra.mxu0 0.0
        %885 = vmatprep.subr.mxu0 0.0
        %886 = vmatpush1.xpose.msra.mxu0 0.0
        %887 = vmatprep.subr.mxu0 0.0
        %888 = vmatpush1.xpose.msra.mxu0 0.0
        %889 = vmatprep.subr.mxu0 0.0
        %890 = vmatpush1.xpose.msra.mxu0 0.0
        %891 = vmatprep.subr.mxu0 0.0
        %892 = vmatpush1.xpose.msra.mxu0 0.0
        %893 = vmatprep.subr.mxu0 0.0
        %894 = vmatpush1.xpose.msra.mxu0 0.0
        %895 = vmatprep.subr.mxu0 0.0
        %896 = vmatpush1.xpose.msra.mxu0 0.0
        %897 = vmatprep.subr.mxu0 0.0
        %898 = vmatpush1.xpose.msra.mxu0 0.0
        %899 = vmatprep.subr.mxu0 0.0
        %900 = vmatpush1.xpose.msra.mxu0 0.0
        %901 = vmatprep.subr.mxu0 0.0
        %902 = vmatpush1.xpose.msra.mxu0 0.0
        %903 = vmatprep.subr.mxu0 0.0
        %904 = vmatpush1.xpose.msra.mxu0 0.0
        %905 = vmatprep.subr.mxu0 0.0
        %906 = vmatpush1.xpose.msra.mxu0 0.0
        %907 = vmatprep.subr.mxu0 0.0
        %908 = vmatpush1.xpose.msra.mxu0 0.0
        %909 = vmatprep.subr.mxu0 0.0
        %910 = vmatpush1.xpose.msra.mxu0 0.0
        %911 = vmatprep.subr.mxu0 0.0
        %912 = vmatpush1.xpose.msra.mxu0 0.0
        %913 = vmatprep.mubr.f32.mxu0 0.0
        %914 = vmatmul.mubr.f32.gmra.mrb[0].mxu0 %v845
        %v915 = vpop.f32.mrb[0].mxu0
        %v916 = vadd.f32 0.0, %v915
        %v917 = vpop.f32.mrb[0].mxu0
        %918 = vdwg.mxu0
        %v919 = vmul.f32 %v916, 0.35355338
        %v920 = vsel %vm328, %v919, -inf
        %921 = vmax.xlane.f32.xlu0 %v920
        %v922 = vpop.xlane.xlu0 %921
        %v923 = vsub.f32 %v919, %v922
        %v924 = vmul.f32 %v923, 1.442695
        %v925 = vpow.pop %v924
        %v926 = vsel %vm328, %v925, 0.0
        %927 = vadd.xlane.f32.xlu0 %v926
        %v928 = vpop.xlane.xlu0 %927
        %v929 = vrcp.pop %v928
        %v930 = vmul.f32 %v925, %v929
        %s931 = scalar_lea.vmem %s238, 24 [#allocation8]
        %932 = vst.msk [vmem:[%s931] sm:$0xff] %vm328, %v930
        %933 = vrot.lane.b32.xlu0 %v322, 40
        %v934 = vpop.permute.xlu0 %933
        %v937 = vsel %vm328, %v930, 0
        %939 = vmatprep.subr.mxu0 0.0
        %940 = vmatpush1.msra.mxu0 %v934
        %941 = vmatprep.subr.mxu0 0.0
        %942 = vmatpush1.msra.mxu0 0.0
        %943 = vmatprep.subr.mxu0 0.0
        %944 = vmatpush1.msra.mxu0 0.0
        %945 = vmatprep.subr.mxu0 0.0
        %946 = vmatpush1.msra.mxu0 0.0
        %947 = vmatprep.subr.mxu0 0.0
        %948 = vmatpush1.msra.mxu0 0.0
        %949 = vmatprep.subr.mxu0 0.0
        %950 = vmatpush1.msra.mxu0 0.0
        %951 = vmatprep.subr.mxu0 0.0
        %952 = vmatpush1.msra.mxu0 0.0
        %953 = vmatprep.subr.mxu0 0.0
        %954 = vmatpush1.msra.mxu0 0.0
        %955 = vmatprep.subr.mxu0 0.0
        %956 = vmatpush1.msra.mxu0 0.0
        %957 = vmatprep.subr.mxu0 0.0
        %958 = vmatpush1.msra.mxu0 0.0
        %959 = vmatprep.subr.mxu0 0.0
        %960 = vmatpush1.msra.mxu0 0.0
        %961 = vmatprep.subr.mxu0 0.0
        %962 = vmatpush1.msra.mxu0 0.0
        %963 = vmatprep.subr.mxu0 0.0
        %964 = vmatpush1.msra.mxu0 0.0
        %965 = vmatprep.subr.mxu0 0.0
        %966 = vmatpush1.msra.mxu0 0.0
        %967 = vmatprep.subr.mxu0 0.0
        %968 = vmatpush1.msra.mxu0 0.0
        %969 = vmatprep.subr.mxu0 0.0
        %970 = vmatpush1.msra.mxu0 0.0
        %971 = vmatprep.subr.mxu0 0.0
        %972 = vmatpush1.msra.mxu0 0.0
        %973 = vmatprep.subr.mxu0 0.0
        %974 = vmatpush1.msra.mxu0 0.0
        %975 = vmatprep.subr.mxu0 0.0
        %976 = vmatpush1.msra.mxu0 0.0
        %977 = vmatprep.subr.mxu0 0.0
        %978 = vmatpush1.msra.mxu0 0.0
        %979 = vmatprep.subr.mxu0 0.0
        %980 = vmatpush1.msra.mxu0 0.0
        %981 = vmatprep.subr.mxu0 0.0
        %982 = vmatpush1.msra.mxu0 0.0
        %983 = vmatprep.subr.mxu0 0.0
        %984 = vmatpush1.msra.mxu0 0.0
        %985 = vmatprep.subr.mxu0 0.0
        %986 = vmatpush1.msra.mxu0 0.0
        %987 = vmatprep.subr.mxu0 0.0
        %988 = vmatpush1.msra.mxu0 0.0
        %989 = vmatprep.subr.mxu0 0.0
        %990 = vmatpush1.msra.mxu0 0.0
        %991 = vmatprep.subr.mxu0 0.0
        %992 = vmatpush1.msra.mxu0 0.0
        %993 = vmatprep.subr.mxu0 0.0
        %994 = vmatpush1.msra.mxu0 0.0
        %995 = vmatprep.subr.mxu0 0.0
        %996 = vmatpush1.msra.mxu0 0.0
        %997 = vmatprep.subr.mxu0 0.0
        %998 = vmatpush1.msra.mxu0 0.0
        %999 = vmatprep.subr.mxu0 0.0
        %1000 = vmatpush1.msra.mxu0 0.0
        %1001 = vmatprep.subr.mxu0 0.0
        %1002 = vmatpush1.msra.mxu0 0.0
        %1003 = vmatprep.mubr.f32.mxu0 0.0
        %1004 = vmatmul.mubr.f32.gmra.mrb[0].mxu0 %v937
        %v1005 = vpop.f32.mrb[0].mxu0
        %v1006 = vadd.f32 0.0, %v1005
        %v1007 = vpop.f32.mrb[0].mxu0
        %1008 = vdwg.mxu0
        %1010 = vrot.lane.b32.xlu0 %v1006, 24
        %v1011 = vpop.permute.xlu0 %1010
        %vm1013 = vcmask 261312
        %1014 = vst.msk [vmem:[%s231] sm:$0xff] %vm1013, %v1011
        %s1015 = sand.u32 %s102, 1
        %s1016 = scalar_lea.sflag [#allocation4], %s1015
        %s1017 = sand.u32 %s102, 1
        %s1018 = smul.addr %s1017, 8
        %s1019 = scalar_lea.vmem [#allocation7], %s1018
        %s1020 = sand.u32 %s128, 1
        %s1021 = scalar_lea.sflag [#allocation9], %s1020
        %s1022 = sand.u32 %s128, 1
        %s1023 = smul.addr %s1022, 32
        %s1024 = scalar_lea.vmem [#allocation8], %s1023
        // Predicated region
        $region41: #{tpu_custom_call.1} parent=31 // pred_check
          %p1025 = pneg %p112
        $region42: #{tpu_custom_call.1} parent=31 // pred_check_branch
          %1027 = sbr.rel (%p1025) target = $region44
        $region43: #{tpu_custom_call.1} parent=31 // pred_region
          %s1029 = ssub.s32 128, 128
          %1030 = vsyncadd %s1016, %s1029
          %s1031 = smul.addr %s26, 128
          %s1032 = scalar_lea.hbm %s3, %s1031
          %s1034 = sshll.u32 %s1019, 4
          %s1035 = int_to_ptr.vmem [resolvable:$true] %s1034
          %1037 = dma.vmem_to_hbm [thread:$0]  %s1035, 128, %s1032, %s1016
        $region44: #{tpu_custom_call.1} parent=31 // pred_fallthru
          _
        // Predicated region
        $region45: #{tpu_custom_call.1} parent=31 // pred_check
          %p1038 = pneg %p138
        $region46: #{tpu_custom_call.1} parent=31 // pred_check_branch
          %1040 = sbr.rel (%p1038) target = $region48
        $region47: #{tpu_custom_call.1} parent=31 // pred_region
          %s1042 = ssub.s32 512, 512
          %1043 = vsyncadd %s1021, %s1042
          %s1044 = smul.addr %s26, 4
          %s1045 = smul.addr %s1044, 128
          %s1046 = scalar_lea.hbm %s4, %s1045
          %s1047 = sshll.u32 %s1024, 4
          %s1048 = int_to_ptr.vmem [resolvable:$true] %s1047
          %1053 = dma.vmem_to_hbm [thread:$0]  %s1048, 512, %s1046, %s1021, 128, 128, 8
        $region48: #{tpu_custom_call.1} parent=31 // pred_fallthru
          _
      $region32: #{tpu_custom_call.1} parent=5 // pred_fallthru
        _
      %p1054 = scmp.le.s32.totalorder 2, %s21
      // Predicated region
      $region49: #{tpu_custom_call.1} parent=5 // pred_check
        %p1055 = pneg %p1054
      $region50: #{tpu_custom_call.1} parent=5 // pred_check_branch
        %1057 = sbr.rel (%p1055) target = $region52
      $region51: #{tpu_custom_call.1} parent=5 // pred_region
        %s1058 = ssub.s32 %s21, 2
        // Predicated region
        $region53: #{tpu_custom_call.1} parent=51 // pred_check
          %p1059 = pneg %p118
        $region54: #{tpu_custom_call.1} parent=51 // pred_check_branch
          %1061 = sbr.rel (%p1059) target = $region56
        $region55: #{tpu_custom_call.1} parent=51 // pred_region
          %s1062 = sand.u32 %s103, 1
          %s1063 = scalar_lea.sflag [#allocation4], %s1062
          %s1064 = sand.u32 %s103, 1
          %s1065 = smul.addr %s1064, 8
          %s1066 = scalar_lea.vmem [#allocation7], %s1065
          %1067 = dma.done %s1063, 128
        $region56: #{tpu_custom_call.1} parent=51 // pred_fallthru
          _
        // Predicated region
        $region57: #{tpu_custom_call.1} parent=51 // pred_check
          %p1068 = pneg %p144
        $region58: #{tpu_custom_call.1} parent=51 // pred_check_branch
          %1070 = sbr.rel (%p1068) target = $region60
        $region59: #{tpu_custom_call.1} parent=51 // pred_region
          %s1071 = sand.u32 %s129, 1
          %s1072 = scalar_lea.sflag [#allocation9], %s1071
          %s1073 = sand.u32 %s129, 1
          %s1074 = smul.addr %s1073, 32
          %s1075 = scalar_lea.vmem [#allocation8], %s1074
          %1076 = dma.done %s1072, 512
        $region60: #{tpu_custom_call.1} parent=51 // pred_fallthru
          _
      $region52: #{tpu_custom_call.1} parent=5 // pred_fallthru
        _
    $region6: #{tpu_custom_call.1} parent=1 // loop_footer
      %s25 = sadd.s32 1, %s21
    $region7: #{tpu_custom_call.1} parent=1 // loop_footer_branch
      %20 = sbr.rel target = $region3
    $region8: #{tpu_custom_call.1} parent=1 // loop_exit
      _
    %1077 = vsyncpa [#allocation3], 1
    %s1078 = scalar_lea.sflag [#allocation3], 1
    %1079 = vsyncpa %s1078, 1
    %1080 = vsyncpa [#allocation6], 1
    %1081 = vsyncpa [#allocation4], 1
    %s1082 = scalar_lea.sflag [#allocation4], 1
    %1083 = vsyncpa %s1082, 1
    %1084 = vsyncpa [#allocation9], 1
    %s1085 = scalar_lea.sflag [#allocation9], 1
    %1086 = vsyncpa %s1085, 1

</llo_original>
